<compile_context>
chip_gen: v5e
topology: v5e:2x2
jax: 0.10.0
libtpu: 0.0.40
codegen_flags: <defaults>
</compile_context>

<pallas_src>
import jax
import jax.numpy as jnp
import numpy as np
from jax.experimental import pallas as pl
from jax.experimental.pallas import tpu as pltpu


def _round_up(x, m):
    return ((x + m - 1) // m) * m


def _largest_divisor_tile(total, preferred, quantum):
    """Largest multiple of `quantum` that divides `total` and is <= preferred."""
    best = quantum
    t = quantum
    limit = min(total, preferred)
    while t <= limit:
        if total % t == 0:
            best = t
        t += quantum
    return best


def _build_thought_kernel(tile_s):
    """Kernel emitting (mixed f32, thought bf16); h cached across V tiles."""

    def kernel(tri_ref, x_ref, recip_ref, wlm_ref, blm_ref, wmixh_ref,
               bmix_ref, mixed_ref, thought_ref, h_ref, mix_ref, rsum_ref):
        s = pl.program_id(1)
        v = pl.program_id(2)

        # Reset the running-sum carry at the start of each batch element.
        @pl.when((s == 0) & (v == 0))
        def _():
            rsum_ref[...] = jnp.zeros_like(rsum_ref)

        # Compute causal-mean hidden states once per (batch, S-tile); reuse
        # across every V tile of the LM head.
        @pl.when(v == 0)
        def _():
            x_tile = x_ref[0]                                     # (tile_s, Hp) bf16
            prefix = jnp.dot(tri_ref[...], x_tile,
                             preferred_element_type=jnp.float32)  # exact 0/1 mask
            tot = rsum_ref[...] + prefix                          # (tile_s, Hp) f32
            h = tot * recip_ref[...]                              # f32 1/(row+1)
            h_ref[...] = h.astype(jnp.bfloat16)
            # mixing_head folded onto h: h @ (W_lm @ w_mix) + (b_lm@w_mix + b_mix)
            mix_ref[...] = (jnp.sum(h * wmixh_ref[...], axis=-1, keepdims=True)
                            + bmix_ref[0])
            rsum_ref[...] = tot[tile_s - 1:, :]                   # carry to next S tile

        logits = jnp.dot(h_ref[...], wlm_ref[...],
                         preferred_element_type=jnp.float32) + blm_ref[...]
        thought_ref[0] = logits.astype(thought_ref.dtype)
        mixed_ref[0] = logits + mix_ref[...]

    return kernel


def _build_base_kernel(tile_s):
    """Kernel emitting only base-model logits (generate_thoughts=False path)."""

    def kernel(tri_ref, x_ref, recip_ref, wlm_ref, blm_ref,
               logits_ref, h_ref, rsum_ref):
        s = pl.program_id(1)
        v = pl.program_id(2)

        @pl.when((s == 0) & (v == 0))
        def _():
            rsum_ref[...] = jnp.zeros_like(rsum_ref)

        @pl.when(v == 0)
        def _():
            x_tile = x_ref[0]
            prefix = jnp.dot(tri_ref[...], x_tile,
                             preferred_element_type=jnp.float32)
            tot = rsum_ref[...] + prefix
            h_ref[...] = (tot * recip_ref[...]).astype(jnp.bfloat16)
            rsum_ref[...] = tot[tile_s - 1:, :]

        logits_ref[0] = jnp.dot(h_ref[...], wlm_ref[...],
                                preferred_element_type=jnp.float32) + blm_ref[...]

    return kernel


def quiet_star_forward(input_ids, embed_table, w_lm, b_lm, w_mix, b_mix,
                       attention_mask=None, generate_thoughts=True,
                       tile_s=None, tile_v=None):
    """Pallas-backed Quiet-STaR forward. Returns (mixed_logits, thought_logits)."""
    del attention_mask  # TODO(synk): unused (see header).
    B, S = input_ids.shape
    _, H = embed_table.shape
    V = w_lm.shape[1]
    assert w_lm.shape == (H, V)
    assert w_mix.shape == (V, 1), "mixing_head requires vocab == hidden_size"

    f32, bf16 = jnp.float32, jnp.bfloat16
    Hp = _round_up(H, 256)   # 256-aligned to feed the full 2x256x256 MXU (v6e/v7x)
    Vp = _round_up(V, 256)

    if tile_s is None:
        tile_s = min(_round_up(S, 8), 256)
    assert tile_s % 8 == 0
    Sp = _round_up(S, tile_s)
    if tile_v is None:
        tile_v = _largest_divisor_tile(Vp, 1024, 256)
    assert Sp % tile_s == 0 and Vp % tile_v == 0

    # ---- host-side (plain JAX) preparation: one gather pass ---------------
    emb_p = jnp.pad(embed_table.astype(bf16), ((0, 0), (0, Hp - H)))
    x = jnp.take(emb_p, input_ids, axis=0)                           # [B, S, Hp] bf16
    if Sp != S:
        x = jnp.pad(x, ((0, 0), (0, Sp - S), (0, 0)))

    # Exact binary lower-triangular prefix mask for one S tile (0/1 is exact in
    # bf16); the causal-mean 1/(row+1) is applied afterwards in f32.
    r = jnp.arange(tile_s)
    tri = (r[None, :] <= r[:, None]).astype(bf16)                    # [tile_s, tile_s]
    recip = (1.0 / (jnp.arange(Sp, dtype=f32) + 1.0)).reshape(Sp, 1)  # [Sp, 1] f32

    w_lm_f = w_lm.astype(f32)
    w_lm_p = jnp.pad(w_lm_f, ((0, Hp - H), (0, Vp - V))).astype(bf16)  # [Hp, Vp]
    b_lm_p = jnp.pad(b_lm.astype(f32), (0, Vp - V)).reshape(1, Vp)     # [1, Vp]

    grid = (B, Sp // tile_s, Vp // tile_v)

    common_in_specs = [
        pl.BlockSpec((tile_s, tile_s), lambda b, s, v: (0, 0)),       # tri mask
        pl.BlockSpec((1, tile_s, Hp), lambda b, s, v: (b, s, 0)),     # embeddings
        pl.BlockSpec((tile_s, 1), lambda b, s, v: (s, 0)),            # 1/(row+1)
        pl.BlockSpec((Hp, tile_v), lambda b, s, v: (0, v)),           # W_lm tile
        pl.BlockSpec((1, tile_v), lambda b, s, v: (0, v)),            # b_lm tile
    ]
    compiler_params = pltpu.CompilerParams(
        dimension_semantics=("parallel", "arbitrary", "arbitrary"),
        vmem_limit_bytes=48 * 1024 * 1024)

    if not generate_thoughts:
        # Base logits only: no mixing compute, no second output.
        kernel = pl.pallas_call(
            _build_base_kernel(tile_s),
            out_shape=jax.ShapeDtypeStruct((B, Sp, Vp), f32),
            grid_spec=pltpu.PrefetchScalarGridSpec(
                num_scalar_prefetch=0,
                grid=grid,
                in_specs=common_in_specs,
                out_specs=pl.BlockSpec((1, tile_s, tile_v),
                                       lambda b, s, v: (b, s, v)),
                scratch_shapes=[
                    pltpu.VMEM((tile_s, Hp), bf16),   # cached hidden states
                    pltpu.VMEM((1, Hp), f32),         # running-sum carry
                ],
            ),
            compiler_params=compiler_params,
        )
        base_p = kernel(tri, x, recip, w_lm_p, b_lm_p)
        base = base_p if (Sp == S and Vp == V) else base_p[:, :S, :V]
        return base, None

    # Fold the N=1 mixing matmul onto h:
    #   mixing_head(logits) = h @ (W_lm @ w_mix) + (b_lm @ w_mix + b_mix)
    w_mix_f = w_mix.astype(f32)
    w_mix_h = jnp.pad((w_lm_f @ w_mix_f).reshape(1, H), ((0, 0), (0, Hp - H)))
    b_mix_eff = (jnp.dot(b_lm.astype(f32), w_mix_f.reshape(V))
                 + b_mix.astype(f32).reshape(())).reshape(1)           # SMEM scalar

    kernel = pl.pallas_call(
        _build_thought_kernel(tile_s),
        out_shape=(jax.ShapeDtypeStruct((B, Sp, Vp), f32),    # mixed logits
                   jax.ShapeDtypeStruct((B, Sp, Vp), bf16)),  # thought logits (bf16
                                                              # to halve writeback)
        grid_spec=pltpu.PrefetchScalarGridSpec(
            num_scalar_prefetch=0,
            grid=grid,
            in_specs=common_in_specs + [
                pl.BlockSpec((1, Hp), lambda b, s, v: (0, 0)),        # W_lm @ w_mix
                pl.BlockSpec(memory_space=pltpu.MemorySpace.SMEM),    # folded bias
            ],
            out_specs=[
                pl.BlockSpec((1, tile_s, tile_v), lambda b, s, v: (b, s, v)),
                pl.BlockSpec((1, tile_s, tile_v), lambda b, s, v: (b, s, v)),
            ],
            scratch_shapes=[
                pltpu.VMEM((tile_s, Hp), bf16),   # cached hidden states
                pltpu.VMEM((tile_s, 1), f32),     # per-row mix value
                pltpu.VMEM((1, Hp), f32),         # running-sum carry
            ],
        ),
        compiler_params=compiler_params,
    )
    mixed_p, thought_p = kernel(tri, x, recip, w_lm_p, b_lm_p, w_mix_h, b_mix_eff)

    if Sp == S and Vp == V:
        return mixed_p, thought_p
    return mixed_p[:, :S, :V], thought_p[:, :S, :V]


def _reference(input_ids, embed_table, w_lm, b_lm, w_mix, b_mix):
    """Pure-JAX f32 reference mirroring the PyTorch forward (incl. prefix loop)."""
    B, S = input_ids.shape

    def base_model(ids):
        e = jnp.take(embed_table, ids, axis=0)
        csum = jnp.cumsum(e, axis=1)
        denom = (jnp.arange(ids.shape[1]) + 1.0).reshape(1, -1, 1)
        h = csum / denom
        return h @ w_lm + b_lm

    base_logits = base_model(input_ids)
    thoughts = []
    for idx in range(S):
        ctx = input_ids[:, :idx + 1]
        thoughts.append(base_model(ctx)[:, -1:, :])
    thought_logits = jnp.concatenate(thoughts, axis=1)
    mixed = base_logits + (thought_logits @ w_mix + b_mix)
    return mixed, thought_logits


if __name__ == "__main__":
    B, S, H = 2, 8, 32
    V = H  # mixing_head = Linear(hidden_size, 1) applied to logits => V == H

    key = jax.random.PRNGKey(0)
    k_ids, k_emb, k_wlm, k_blm, k_wmix, k_bmix = jax.random.split(key, 6)

    input_ids = jax.random.randint(k_ids, (B, S), 0, V, dtype=jnp.int32)
    embed_table = jax.random.normal(k_emb, (V, H), dtype=jnp.float32) * 0.1
    w_lm = jax.random.normal(k_wlm, (H, V), dtype=jnp.float32) * 0.1
    b_lm = jax.random.normal(k_blm, (V,), dtype=jnp.float32) * 0.01
    w_mix = jax.random.normal(k_wmix, (V, 1), dtype=jnp.float32) * 0.1
    b_mix = jax.random.normal(k_bmix, (1,), dtype=jnp.float32) * 0.01

    mixed, thought = quiet_star_forward(
        input_ids, embed_table, w_lm, b_lm, w_mix, b_mix)
    base_only, none_out = quiet_star_forward(
        input_ids, embed_table, w_lm, b_lm, w_mix, b_mix,
        generate_thoughts=False)
    mixed, thought, base_only = jax.block_until_ready((mixed, thought, base_only))

    ref_mixed, ref_thought = _reference(
        input_ids, embed_table, w_lm, b_lm, w_mix, b_mix)

    # bf16 MXU path (and bf16 thought storage) => loosened tolerance vs f32 ref.
    np.testing.assert_allclose(np.asarray(mixed), np.asarray(ref_mixed),
                               rtol=2e-2, atol=5e-3)
    np.testing.assert_allclose(np.asarray(thought).astype(np.float32),
                               np.asarray(ref_thought), rtol=2e-2, atol=5e-3)
    np.testing.assert_allclose(np.asarray(base_only), np.asarray(ref_thought),
                               rtol=2e-2, atol=5e-3)
    assert none_out is None
    print("KERNEL_OK")
</pallas_src>

<mosaic_0001>
module attributes {stable_mosaic.version = 11 : i64} {
  func.func @kernel(%arg0: i32, %arg1: i32, %arg2: i32, %arg3: memref<8x8xbf16, #tpu.memory_space<vmem>>, %arg4: memref<1x8x256xbf16, #tpu.memory_space<vmem>>, %arg5: memref<8x1xf32, #tpu.memory_space<vmem>>, %arg6: memref<256x256xbf16, #tpu.memory_space<vmem>>, %arg7: memref<1x256xf32, #tpu.memory_space<vmem>>, %arg8: memref<1x256xf32, #tpu.memory_space<vmem>>, %arg9: memref<1xf32, #tpu.memory_space<smem>>, %arg10: memref<1x8x256xf32, #tpu.memory_space<vmem>>, %arg11: memref<1x8x256xbf16, #tpu.memory_space<vmem>>, %arg12: memref<8x256xbf16, #tpu.memory_space<vmem>>, %arg13: memref<8x1xf32, #tpu.memory_space<vmem>>, %arg14: memref<1x256xf32, #tpu.memory_space<vmem>>) attributes {dimension_semantics = [#tpu.dimension_semantics<parallel>, #tpu.dimension_semantics<arbitrary>, #tpu.dimension_semantics<arbitrary>], iteration_bounds = array<i64: 2, 1, 1>, scalar_prefetch = 0 : i64, scratch_operands = 3 : i64, tpu.core_type = #tpu.core_type<tc>, window_params = [{pipeline_mode = #tpu.pipeline_mode<synchronous>, transform_indices = @transform_0, window_bounds = array<i64: 8, 8>}, {transform_indices = @transform_1, window_bounds = array<i64: 1, 8, 256>}, {transform_indices = @transform_2, window_bounds = array<i64: 8, 1>}, {transform_indices = @transform_3, window_bounds = array<i64: 256, 256>}, {transform_indices = @transform_4, window_bounds = array<i64: 1, 256>}, {pipeline_mode = #tpu.pipeline_mode<synchronous>, transform_indices = @transform_5, window_bounds = array<i64: 1, 256>}, {transform_indices = @transform_6, window_bounds = array<i64: 1>}, {transform_indices = @transform_7, window_bounds = array<i64: 1, 8, 256>}, {transform_indices = @transform_8, window_bounds = array<i64: 1, 8, 256>}]} {
    %c0_i32 = arith.constant 0 : i32
    %0 = arith.cmpi eq, %arg1, %c0_i32 : i32
    %c0_i32_0 = arith.constant 0 : i32
    %1 = arith.cmpi eq, %arg2, %c0_i32_0 : i32
    %2 = arith.andi %0, %1 : i1
    %3 = arith.extui %2 : i1 to i32
    %c0_i32_1 = arith.constant 0 : i32
    %4 = arith.cmpi ne, %3, %c0_i32_1 : i32
    scf.if %4 {
      %cst_17 = arith.constant 0.000000e+00 : f32
      %24 = vector.broadcast %cst_17 : f32 to vector<1x256xf32>
      %c0_18 = arith.constant 0 : index
      %c0_19 = arith.constant 0 : index
      %25 = vector.load %arg14[%c0_18, %c0_19] : memref<1x256xf32, #tpu.memory_space<vmem>>, vector<1x256xf32>
      tpu.vector_store %arg14[%c0_18, %c0_19], %24 {strides = array<i32>} : memref<1x256xf32, #tpu.memory_space<vmem>>, vector<1x256xf32>,
    } else {
    }
    %c0_i32_2 = arith.constant 0 : i32
    %5 = arith.cmpi eq, %arg2, %c0_i32_2 : i32
    %6 = arith.extui %5 : i1 to i32
    %c0_i32_3 = arith.constant 0 : i32
    %7 = arith.cmpi ne, %6, %c0_i32_3 : i32
    scf.if %7 {
      %c0_17 = arith.constant 0 : index
      %c0_18 = arith.constant 0 : index
      %c0_19 = arith.constant 0 : index
      %24 = vector.load %arg4[%c0_17, %c0_18, %c0_19] : memref<1x8x256xbf16, #tpu.memory_space<vmem>>, vector<1x8x256xbf16>
      %25 = vector.shape_cast %24 : vector<1x8x256xbf16> to vector<8x256xbf16>
      %c0_20 = arith.constant 0 : index
      %c0_21 = arith.constant 0 : index
      %26 = vector.load %arg3[%c0_20, %c0_21] : memref<8x8xbf16, #tpu.memory_space<vmem>>, vector<8x8xbf16>
      %cst_22 = arith.constant dense<0.000000e+00> : vector<8x256xf32>
      %27 = tpu.matmul %26, %25, %cst_22 {dimension_numbers = #tpu.dot_dimension_numbers<[1], [0], [0], [1], [0, 0, 1, 1], [], []>} : vector<8x8xbf16>, vector<8x256xbf16>, vector<8x256xf32> -> vector<8x256xf32>
      %c0_23 = arith.constant 0 : index
      %c0_24 = arith.constant 0 : index
      %28 = vector.load %arg14[%c0_23, %c0_24] : memref<1x256xf32, #tpu.memory_space<vmem>>, vector<1x256xf32>
      %29 = vector.broadcast %28 : vector<1x256xf32> to vector<8x256xf32>
      %30 = arith.addf %29, %27 : vector<8x256xf32>
      %c0_25 = arith.constant 0 : index
      %c0_26 = arith.constant 0 : index
      %31 = vector.load %arg5[%c0_25, %c0_26] : memref<8x1xf32, #tpu.memory_space<vmem>>, vector<8x1xf32>
      %32 = vector.broadcast %31 : vector<8x1xf32> to vector<8x256xf32>
      %33 = arith.mulf %30, %32 : vector<8x256xf32>
      %34 = arith.truncf %33 : vector<8x256xf32> to vector<8x256xbf16>
      %c0_27 = arith.constant 0 : index
      %c0_28 = arith.constant 0 : index
      %35 = vector.load %arg12[%c0_27, %c0_28] : memref<8x256xbf16, #tpu.memory_space<vmem>>, vector<8x256xbf16>
      tpu.vector_store %arg12[%c0_27, %c0_28], %34 {strides = array<i32>} : memref<8x256xbf16, #tpu.memory_space<vmem>>, vector<8x256xbf16>,
      %c0_29 = arith.constant 0 : index
      %c0_30 = arith.constant 0 : index
      %36 = vector.load %arg8[%c0_29, %c0_30] : memref<1x256xf32, #tpu.memory_space<vmem>>, vector<1x256xf32>
      %37 = vector.broadcast %36 : vector<1x256xf32> to vector<8x256xf32>
      %38 = arith.mulf %33, %37 : vector<8x256xf32>
      %cst_31 = arith.constant dense<0.000000e+00> : vector<8xf32>
      %39 = vector.multi_reduction <add>, %38, %cst_31 [1] : vector<8x256xf32> to vector<8xf32>
      %40 = vector.shape_cast %39 : vector<8xf32> to vector<8x1xf32>
      %c0_32 = arith.constant 0 : index
      %41 = memref.load %arg9[%c0_32] : memref<1xf32, #tpu.memory_space<smem>>
      %42 = vector.broadcast %41 : f32 to vector<8x1xf32>
      %43 = arith.addf %40, %42 : vector<8x1xf32>
      %c0_33 = arith.constant 0 : index
      %c0_34 = arith.constant 0 : index
      %44 = vector.load %arg13[%c0_33, %c0_34] : memref<8x1xf32, #tpu.memory_space<vmem>>, vector<8x1xf32>
      tpu.vector_store %arg13[%c0_33, %c0_34], %43 {strides = array<i32>} : memref<8x1xf32, #tpu.memory_space<vmem>>, vector<8x1xf32>,
      %45 = vector.extract_strided_slice %30 {offsets = [7, 0], sizes = [1, 256], strides = [1, 1]} : vector<8x256xf32> to vector<1x256xf32>
      %c0_35 = arith.constant 0 : index
      %c0_36 = arith.constant 0 : index
      %46 = vector.load %arg14[%c0_35, %c0_36] : memref<1x256xf32, #tpu.memory_space<vmem>>, vector<1x256xf32>
      tpu.vector_store %arg14[%c0_35, %c0_36], %45 {strides = array<i32>} : memref<1x256xf32, #tpu.memory_space<vmem>>, vector<1x256xf32>,
    } else {
    }
    %c0 = arith.constant 0 : index
    %c0_4 = arith.constant 0 : index
    %8 = vector.load %arg12[%c0, %c0_4] : memref<8x256xbf16, #tpu.memory_space<vmem>>, vector<8x256xbf16>
    %c0_5 = arith.constant 0 : index
    %c0_6 = arith.constant 0 : index
    %9 = vector.load %arg6[%c0_5, %c0_6] : memref<256x256xbf16, #tpu.memory_space<vmem>>, vector<256x256xbf16>
    %cst = arith.constant dense<0.000000e+00> : vector<8x256xf32>
    %10 = tpu.matmul %8, %9, %cst {dimension_numbers = #tpu.dot_dimension_numbers<[1], [0], [0], [1], [0, 0, 1, 1], [], []>} : vector<8x256xbf16>, vector<256x256xbf16>, vector<8x256xf32> -> vector<8x256xf32>
    %c0_7 = arith.constant 0 : index
    %c0_8 = arith.constant 0 : index
    %11 = vector.load %arg7[%c0_7, %c0_8] : memref<1x256xf32, #tpu.memory_space<vmem>>, vector<1x256xf32>
    %12 = vector.broadcast %11 : vector<1x256xf32> to vector<8x256xf32>
    %13 = arith.addf %10, %12 : vector<8x256xf32>
    %14 = arith.truncf %13 : vector<8x256xf32> to vector<8x256xbf16>
    %c0_9 = arith.constant 0 : index
    %c0_10 = arith.constant 0 : index
    %c0_11 = arith.constant 0 : index
    %15 = vector.load %arg11[%c0_9, %c0_10, %c0_11] : memref<1x8x256xbf16, #tpu.memory_space<vmem>>, vector<1x8x256xbf16>
    %16 = vector.shape_cast %15 : vector<1x8x256xbf16> to vector<8x256xbf16>
    %17 = vector.shape_cast %14 : vector<8x256xbf16> to vector<1x8x256xbf16>
    tpu.vector_store %arg11[%c0_9, %c0_10, %c0_11], %17 {strides = array<i32>} : memref<1x8x256xbf16, #tpu.memory_space<vmem>>, vector<1x8x256xbf16>,
    %c0_12 = arith.constant 0 : index
    %c0_13 = arith.constant 0 : index
    %18 = vector.load %arg13[%c0_12, %c0_13] : memref<8x1xf32, #tpu.memory_space<vmem>>, vector<8x1xf32>
    %19 = vector.broadcast %18 : vector<8x1xf32> to vector<8x256xf32>
    %20 = arith.addf %13, %19 : vector<8x256xf32>
    %c0_14 = arith.constant 0 : index
    %c0_15 = arith.constant 0 : index
    %c0_16 = arith.constant 0 : index
    %21 = vector.load %arg10[%c0_14, %c0_15, %c0_16] : memref<1x8x256xf32, #tpu.memory_space<vmem>>, vector<1x8x256xf32>
    %22 = vector.shape_cast %21 : vector<1x8x256xf32> to vector<8x256xf32>
    %23 = vector.shape_cast %20 : vector<8x256xf32> to vector<1x8x256xf32>
    tpu.vector_store %arg10[%c0_14, %c0_15, %c0_16], %23 {strides = array<i32>} : memref<1x8x256xf32, #tpu.memory_space<vmem>>, vector<1x8x256xf32>,
    return
  }
  func.func @transform_0(%arg0: i32, %arg1: i32, %arg2: i32) -> (i32, i32) {
    %c0_i32 = arith.constant 0 : i32
    %c0_i32_0 = arith.constant 0 : i32
    %c0_i32_1 = arith.constant 0 : i32
    return %c0_i32, %c0_i32_0 : i32, i32
  }
  func.func @transform_1(%arg0: i32, %arg1: i32, %arg2: i32) -> (i32, i32, i32) {
    %c0_i32 = arith.constant 0 : i32
    %c0_i32_0 = arith.constant 0 : i32
    return %arg0, %arg1, %c0_i32 : i32, i32, i32
  }
  func.func @transform_2(%arg0: i32, %arg1: i32, %arg2: i32) -> (i32, i32) {
    %c0_i32 = arith.constant 0 : i32
    %c0_i32_0 = arith.constant 0 : i32
    return %arg1, %c0_i32 : i32, i32
  }
  func.func @transform_3(%arg0: i32, %arg1: i32, %arg2: i32) -> (i32, i32) {
    %c0_i32 = arith.constant 0 : i32
    %c0_i32_0 = arith.constant 0 : i32
    return %c0_i32, %arg2 : i32, i32
  }
  func.func @transform_4(%arg0: i32, %arg1: i32, %arg2: i32) -> (i32, i32) {
    %c0_i32 = arith.constant 0 : i32
    %c0_i32_0 = arith.constant 0 : i32
    return %c0_i32, %arg2 : i32, i32
  }
  func.func @transform_5(%arg0: i32, %arg1: i32, %arg2: i32) -> (i32, i32) {
    %c0_i32 = arith.constant 0 : i32
    %c0_i32_0 = arith.constant 0 : i32
    %c0_i32_1 = arith.constant 0 : i32
    return %c0_i32, %c0_i32_0 : i32, i32
  }
  func.func @transform_6(%arg0: i32, %arg1: i32, %arg2: i32) -> i32 {
    %c0_i32 = arith.constant 0 : i32
    %c0_i32_0 = arith.constant 0 : i32
    return %c0_i32 : i32
  }
  func.func @transform_7(%arg0: i32, %arg1: i32, %arg2: i32) -> (i32, i32, i32) {
    %c0_i32 = arith.constant 0 : i32
    return %arg0, %arg1, %arg2 : i32, i32, i32
  }
  func.func @transform_8(%arg0: i32, %arg1: i32, %arg2: i32) -> (i32, i32, i32) {
    %c0_i32 = arith.constant 0 : i32
    return %arg0, %arg1, %arg2 : i32, i32, i32
  }
}

</mosaic_0001>

<llo_original>
// kernel: tpu_custom_call.1
$region0: #{tpu_custom_call.1}
  #allocation0 [shape = 'u32[]', space=smem, size = 0x4, offset = 0x4, fixed_abs, tag = 'smem constant byte address 0x4 - core index']
  #allocation1 [shape = 'u32[72,128]{1,0:T(1,128)}', space=vmem, size = 0x9000, scoped, tag = 'internal scratch']
  #allocation2 [shape = 'bf16[8,256]{1,0:T(8,128)(2,1)}', space=vmem, size = 0x1000, scoped, tag = 'scratch operand']
  #allocation3 [shape = 'f32[8,1]{1,0:T(8,128)}', space=vmem, size = 0x1000, scoped, tag = 'scratch operand']
  #allocation4 [shape = 'f32[1,256]{1,0:T(1,128)}', space=vmem, size = 0x400, scoped, tag = 'scratch operand']
  #allocation5 [shape = 'f32[1]{0:T(128)S(6)}', space=smem, size = 0x200, scoped, tag = 'scoped memory for tpu_custom_call.1']
  %s0 = inlined_call_operand.vmem [shape: bf16[8,8], index: 0, kind: input, shape index: {}]
  %s1 = inlined_call_operand.hbm [shape: bf16[2,8,256], index: 1, kind: input, shape index: {}]
  %s2 = inlined_call_operand.vmem [shape: f32[8,1], index: 2, kind: input, shape index: {}]
  %s3 = inlined_call_operand.hbm [shape: bf16[256,256], index: 3, kind: input, shape index: {}]
  %s4 = inlined_call_operand.vmem [shape: f32[1,256], index: 4, kind: input, shape index: {}]
  %s5 = inlined_call_operand.vmem [shape: f32[1,256], index: 5, kind: input, shape index: {}]
  %s6 = inlined_call_operand.<no memory space> [shape: f32[1], index: 6, kind: input, shape index: {}]
  %s7 = inlined_call_operand.hbm [shape: f32[2,8,256], index: 7, kind: output, shape index: {0}]
  %s8 = inlined_call_operand.hbm [shape: bf16[2,8,256], index: 8, kind: output, shape index: {1}]
  %9 = xla_tuple %s7, %s8
  %s10 = sld [smem:[#allocation0]]
  $region85: #{tpu_custom_call.1} parent=0
    _
  %s12 = ssub.s32 1, %s10
  %s13 = scalar_select 0, %s12, %s10
  %14 = sst [smem:[#allocation5]] %s6
  $region1: #{tpu_custom_call.1} parent=0
    #allocation6 [shape = 'u8[8192]{0}', space=vmem, size = 0x2000, scoped, tag = 'input window, operand 1']
    #allocation7 [shape = 's32[2]{0}', space=sflag, size = 0x8, scoped, tag = 'scoped memory for tpu_custom_call.1']
    #allocation8 [shape = 's32[2]{0}', space=sflag, size = 0x8, scoped, tag = 'scoped memory for tpu_custom_call.1']
    #allocation9 [shape = 'u8[131072]{0}', space=vmem, size = 0x20000, scoped, tag = 'input window, operand 3, single buffered']
    #allocation10 [shape = 's32[1]{0}', space=sflag, size = 0x4, scoped, tag = 'scoped memory for tpu_custom_call.1']
    #allocation11 [shape = 'u8[16384]{0}', space=vmem, size = 0x4000, scoped, tag = 'output window, operand 0']
    #allocation12 [shape = 'u8[8192]{0}', space=vmem, size = 0x2000, scoped, tag = 'output window, operand 1']
    #allocation13 [shape = 's32[2]{0}', space=sflag, size = 0x8, scoped, tag = 'scoped memory for tpu_custom_call.1']
    %15 = vsyncpa [#allocation7], 0
    %s16 = scalar_lea.sflag [#allocation7], 1
    %17 = vsyncpa %s16, 0
    %18 = vsyncpa [#allocation10], 0
    %19 = vsyncpa [#allocation8], 0
    %s20 = scalar_lea.sflag [#allocation8], 1
    %21 = vsyncpa %s20, 0
    %22 = vsyncpa [#allocation13], 0
    %s23 = scalar_lea.sflag [#allocation13], 1
    %24 = vsyncpa %s23, 0
    loop: start=0, step=1, limit=4
    $region2: #{tpu_custom_call.1} parent=1 // loop_pre_header
      _
    $region3: #{tpu_custom_call.1} parent=1 // loop_header
      %s26 = sphi 0, %s30
      %p27 = scmp.ge.s32.totalorder %s26, 4
      %s33 = sphi 0, %s52
      %s34 = sphi 0, %s48
      %s35 = sphi 0, %s44
      %s36 = sphi 0, %s33
      %s37 = sphi 0, %s34
      %s38 = sphi 0, %s35
      %s39 = sphi 0, %s36
      %s40 = sphi 0, %s37
      %s41 = sphi 0, %s38
      %s53 = sphi 0, %s53
      %s55 = sphi 0, %s53
      %s56 = sphi 0, %s55
      %s70 = sphi 0, %s56
      %s78 = sphi 0, %s80
      %s81 = sphi 0, %s78
      %s82 = sphi 0, %s81
      %s98 = sphi 0, %s82
      %s104 = sphi 0, %s106
      %s107 = sphi 0, %s104
      %s108 = sphi 0, %s107
      %s124 = sphi 0, %s108
      %s130 = sphi 0, %s132
      %s133 = sphi 0, %s130
      %s134 = sphi 0, %s133
      %s150 = sphi 0, %s134
      %s156 = sphi 0, %s158
      %s159 = sphi 0, %s156
      %s160 = sphi 0, %s159
      %s176 = sphi 0, %s160
      %s180 = sphi 0, %s180
      %s182 = sphi 0, %s180
      %s183 = sphi 0, %s182
      %s197 = sphi 0, %s183
      %s201 = sphi 0, %s201
      %s203 = sphi 0, %s201
      %s204 = sphi 0, %s203
      %s218 = sphi 0, %s204
      %s228 = sphi 0, %s230
      %s231 = sphi 0, %s228
      %s232 = sphi 0, %s231
      %s248 = sphi 0, %s232
      %s258 = sphi 0, %s260
      %s261 = sphi 0, %s258
      %s262 = sphi 0, %s261
      %s278 = sphi 0, %s262
    $region4: #{tpu_custom_call.1} parent=1 // loop_header_branch
      %29 = sbr.rel (%p27) target = $region8
    $region5: #{tpu_custom_call.1} parent=1 // loop_body
      %s31 = ssub.s32 %s26, 1
      %s32 = ssub.s32 %s26, 2
      %s42 = sadd.s32 1, %s35
      %p43 = scmp.ge.s32.totalorder %s42, 1
      %s44 = scalar_select %p43, 0, %s42
      %s45 = sadd.s32 1, %s34
      %s46 = scalar_select %p43, %s45, %s34
      %p47 = scmp.ge.s32.totalorder %s46, 1
      %s48 = scalar_select %p47, 0, %s46
      %s49 = sadd.s32 1, %s33
      %s50 = scalar_select %p47, %s49, %s33
      %p51 = scmp.ge.s32.totalorder %s50, 2
      %s52 = scalar_select %p51, 0, %s50
      %s54 = sadd.s32 %s53, 1
      %p57 = scmp.eq.s32.totalorder %s26, 1
      %p58 = scmp.ne.s32.totalorder %s53, %s55
      %p59 = scmp.eq.s32.totalorder %s26, 0
      %p60 = por %p58, %p59
      %p61 = scmp.ne.s32.totalorder %s53, %s55
      %p62 = scmp.eq.s32.totalorder %s31, 1
      %p63 = por %p61, %p62
      %p64 = scmp.ne.s32.totalorder %s55, %s56
      %p65 = scmp.eq.s32.totalorder %s31, 0
      %p66 = por %p64, %p65
      %p67 = scmp.ne.s32.totalorder %s55, %s56
      %p68 = scmp.eq.s32.totalorder %s32, 1
      %p69 = por %p67, %p68
      %p71 = scmp.ne.s32.totalorder %s56, %s70
      %p72 = scmp.eq.s32.totalorder %s32, 0
      %p73 = por %p71, %p72
      %s74 = ssub.s32 %s33, %s52
      %s75 = ssub.s32 %s34, %s48
      %s76 = sor.u32 %s74, %s75
      %p77 = scmp.eq.s32.totalorder %s76, 0
      %s79 = sadd.s32 %s78, 1
      %s80 = scalar_select %p77, %s78, %s79
      %p83 = pneg %p77
      %p84 = scmp.eq.s32.totalorder %s26, 1
      %p85 = por %p83, %p84
      %p86 = scmp.ne.s32.totalorder %s78, %s81
      %p87 = scmp.eq.s32.totalorder %s26, 0
      %p88 = por %p86, %p87
      %p89 = scmp.ne.s32.totalorder %s78, %s81
      %p90 = scmp.eq.s32.totalorder %s31, 1
      %p91 = por %p89, %p90
      %p92 = scmp.ne.s32.totalorder %s81, %s82
      %p93 = scmp.eq.s32.totalorder %s31, 0
      %p94 = por %p92, %p93
      %p95 = scmp.ne.s32.totalorder %s81, %s82
      %p96 = scmp.eq.s32.totalorder %s32, 1
      %p97 = por %p95, %p96
      %p99 = scmp.ne.s32.totalorder %s82, %s98
      %p100 = scmp.eq.s32.totalorder %s32, 0
      %p101 = por %p99, %p100
      %s102 = ssub.s32 %s34, %s48
      %p103 = scmp.eq.s32.totalorder %s102, 0
      %s105 = sadd.s32 %s104, 1
      %s106 = scalar_select %p103, %s104, %s105
      %p109 = pneg %p103
      %p110 = scmp.eq.s32.totalorder %s26, 1
      %p111 = por %p109, %p110
      %p112 = scmp.ne.s32.totalorder %s104, %s107
      %p113 = scmp.eq.s32.totalorder %s26, 0
      %p114 = por %p112, %p113
      %p115 = scmp.ne.s32.totalorder %s104, %s107
      %p116 = scmp.eq.s32.totalorder %s31, 1
      %p117 = por %p115, %p116
      %p118 = scmp.ne.s32.totalorder %s107, %s108
      %p119 = scmp.eq.s32.totalorder %s31, 0
      %p120 = por %p118, %p119
      %p121 = scmp.ne.s32.totalorder %s107, %s108
      %p122 = scmp.eq.s32.totalorder %s32, 1
      %p123 = por %p121, %p122
      %p125 = scmp.ne.s32.totalorder %s108, %s124
      %p126 = scmp.eq.s32.totalorder %s32, 0
      %p127 = por %p125, %p126
      %s128 = ssub.s32 %s35, %s44
      %p129 = scmp.eq.s32.totalorder %s128, 0
      %s131 = sadd.s32 %s130, 1
      %s132 = scalar_select %p129, %s130, %s131
      %p135 = pneg %p129
      %p136 = scmp.eq.s32.totalorder %s26, 1
      %p137 = por %p135, %p136
      %p138 = scmp.ne.s32.totalorder %s130, %s133
      %p139 = scmp.eq.s32.totalorder %s26, 0
      %p140 = por %p138, %p139
      %p141 = scmp.ne.s32.totalorder %s130, %s133
      %p142 = scmp.eq.s32.totalorder %s31, 1
      %p143 = por %p141, %p142
      %p144 = scmp.ne.s32.totalorder %s133, %s134
      %p145 = scmp.eq.s32.totalorder %s31, 0
      %p146 = por %p144, %p145
      %p147 = scmp.ne.s32.totalorder %s133, %s134
      %p148 = scmp.eq.s32.totalorder %s32, 1
      %p149 = por %p147, %p148
      %p151 = scmp.ne.s32.totalorder %s134, %s150
      %p152 = scmp.eq.s32.totalorder %s32, 0
      %p153 = por %p151, %p152
      %s154 = ssub.s32 %s35, %s44
      %p155 = scmp.eq.s32.totalorder %s154, 0
      %s157 = sadd.s32 %s156, 1
      %s158 = scalar_select %p155, %s156, %s157
      %p161 = pneg %p155
      %p162 = scmp.eq.s32.totalorder %s26, 1
      %p163 = por %p161, %p162
      %p164 = scmp.ne.s32.totalorder %s156, %s159
      %p165 = scmp.eq.s32.totalorder %s26, 0
      %p166 = por %p164, %p165
      %p167 = scmp.ne.s32.totalorder %s156, %s159
      %p168 = scmp.eq.s32.totalorder %s31, 1
      %p169 = por %p167, %p168
      %p170 = scmp.ne.s32.totalorder %s159, %s160
      %p171 = scmp.eq.s32.totalorder %s31, 0
      %p172 = por %p170, %p171
      %p173 = scmp.ne.s32.totalorder %s159, %s160
      %p174 = scmp.eq.s32.totalorder %s32, 1
      %p175 = por %p173, %p174
      %p177 = scmp.ne.s32.totalorder %s160, %s176
      %p178 = scmp.eq.s32.totalorder %s32, 0
      %p179 = por %p177, %p178
      %s181 = sadd.s32 %s180, 1
      %p184 = scmp.eq.s32.totalorder %s26, 1
      %p185 = scmp.ne.s32.totalorder %s180, %s182
      %p186 = scmp.eq.s32.totalorder %s26, 0
      %p187 = por %p185, %p186
      %p188 = scmp.ne.s32.totalorder %s180, %s182
      %p189 = scmp.eq.s32.totalorder %s31, 1
      %p190 = por %p188, %p189
      %p191 = scmp.ne.s32.totalorder %s182, %s183
      %p192 = scmp.eq.s32.totalorder %s31, 0
      %p193 = por %p191, %p192
      %p194 = scmp.ne.s32.totalorder %s182, %s183
      %p195 = scmp.eq.s32.totalorder %s32, 1
      %p196 = por %p194, %p195
      %p198 = scmp.ne.s32.totalorder %s183, %s197
      %p199 = scmp.eq.s32.totalorder %s32, 0
      %p200 = por %p198, %p199
      %s202 = sadd.s32 %s201, 1
      %p205 = scmp.eq.s32.totalorder %s26, 1
      %p206 = scmp.ne.s32.totalorder %s201, %s203
      %p207 = scmp.eq.s32.totalorder %s26, 0
      %p208 = por %p206, %p207
      %p209 = scmp.ne.s32.totalorder %s201, %s203
      %p210 = scmp.eq.s32.totalorder %s31, 1
      %p211 = por %p209, %p210
      %p212 = scmp.ne.s32.totalorder %s203, %s204
      %p213 = scmp.eq.s32.totalorder %s31, 0
      %p214 = por %p212, %p213
      %p215 = scmp.ne.s32.totalorder %s203, %s204
      %p216 = scmp.eq.s32.totalorder %s32, 1
      %p217 = por %p215, %p216
      %p219 = scmp.ne.s32.totalorder %s204, %s218
      %p220 = scmp.eq.s32.totalorder %s32, 0
      %p221 = por %p219, %p220
      %s222 = ssub.s32 %s33, %s52
      %s223 = ssub.s32 %s34, %s48
      %s224 = sor.u32 %s222, %s223
      %s225 = ssub.s32 %s35, %s44
      %s226 = sor.u32 %s224, %s225
      %p227 = scmp.eq.s32.totalorder %s226, 0
      %s229 = sadd.s32 %s228, 1
      %s230 = scalar_select %p227, %s228, %s229
      %p233 = pneg %p227
      %p234 = scmp.eq.s32.totalorder %s26, 1
      %p235 = por %p233, %p234
      %p236 = scmp.ne.s32.totalorder %s228, %s231
      %p237 = scmp.eq.s32.totalorder %s26, 0
      %p238 = por %p236, %p237
      %p239 = scmp.ne.s32.totalorder %s228, %s231
      %p240 = scmp.eq.s32.totalorder %s31, 1
      %p241 = por %p239, %p240
      %p242 = scmp.ne.s32.totalorder %s231, %s232
      %p243 = scmp.eq.s32.totalorder %s31, 0
      %p244 = por %p242, %p243
      %p245 = scmp.ne.s32.totalorder %s231, %s232
      %p246 = scmp.eq.s32.totalorder %s32, 1
      %p247 = por %p245, %p246
      %p249 = scmp.ne.s32.totalorder %s232, %s248
      %p250 = scmp.eq.s32.totalorder %s32, 0
      %p251 = por %p249, %p250
      %s252 = ssub.s32 %s33, %s52
      %s253 = ssub.s32 %s34, %s48
      %s254 = sor.u32 %s252, %s253
      %s255 = ssub.s32 %s35, %s44
      %s256 = sor.u32 %s254, %s255
      %p257 = scmp.eq.s32.totalorder %s256, 0
      %s259 = sadd.s32 %s258, 1
      %s260 = scalar_select %p257, %s258, %s259
      %p263 = pneg %p257
      %p264 = scmp.eq.s32.totalorder %s26, 1
      %p265 = por %p263, %p264
      %p266 = scmp.ne.s32.totalorder %s258, %s261
      %p267 = scmp.eq.s32.totalorder %s26, 0
      %p268 = por %p266, %p267
      %p269 = scmp.ne.s32.totalorder %s258, %s261
      %p270 = scmp.eq.s32.totalorder %s31, 1
      %p271 = por %p269, %p270
      %p272 = scmp.ne.s32.totalorder %s261, %s262
      %p273 = scmp.eq.s32.totalorder %s31, 0
      %p274 = por %p272, %p273
      %p275 = scmp.ne.s32.totalorder %s261, %s262
      %p276 = scmp.eq.s32.totalorder %s32, 1
      %p277 = por %p275, %p276
      %p279 = scmp.ne.s32.totalorder %s262, %s278
      %p280 = scmp.eq.s32.totalorder %s32, 0
      %p281 = por %p279, %p280
      %p282 = scmp.le.s32.totalorder 1, %s26
      %p283 = scmp.lt.s32.totalorder %s26, 3
      %p284 = pnand %p282, %p283
      %p285 = pneg %p284
      // Predicated region
      $region9: #{tpu_custom_call.1} parent=5 // pred_check
        _
      $region10: #{tpu_custom_call.1} parent=5 // pred_check_branch
        %287 = sbr.rel (%p284) target = $region12
      $region11: #{tpu_custom_call.1} parent=5 // pred_region
        %s288 = ssub.s32 %s26, 1
        // Predicated region
        $region13: #{tpu_custom_call.1} parent=11 // pred_check
          %p289 = pneg %p66
        $region14: #{tpu_custom_call.1} parent=11 // pred_check_branch
          %291 = sbr.rel (%p289) target = $region16
        $region15: #{tpu_custom_call.1} parent=11 // pred_region
          _
        $region16: #{tpu_custom_call.1} parent=11 // pred_fallthru
          _
        // Predicated region
        $region17: #{tpu_custom_call.1} parent=11 // pred_check
          %p292 = pneg %p120
        $region18: #{tpu_custom_call.1} parent=11 // pred_check_branch
          %294 = sbr.rel (%p292) target = $region20
        $region19: #{tpu_custom_call.1} parent=11 // pred_region
          %p295 = scmp.lt.s32.totalorder %s37, 0
          %s296 = scalar_select %p295, %s37, 0
          %s297 = smul.addr %s296, 8
          %s298 = scalar_lea.vmem %s2, %s297
        $region20: #{tpu_custom_call.1} parent=11 // pred_fallthru
          _
        // Predicated region
        $region21: #{tpu_custom_call.1} parent=11 // pred_check
          %p299 = pneg %p146
        $region22: #{tpu_custom_call.1} parent=11 // pred_check_branch
          %301 = sbr.rel (%p299) target = $region24
        $region23: #{tpu_custom_call.1} parent=11 // pred_region
          %s302 = smul.u32 2, %s38
          %304 = vsyncadd [#allocation10], 0
          %s305 = smul.addr %s302, 4
          %s306 = scalar_lea.hbm %s3, %s305
          %s307 = sshll.u32 %s306, 4
          %s308 = int_to_ptr.hbm [resolvable:$true] %s307
          %s309 = sshll.u32 [#allocation9], 4
          %s310 = int_to_ptr.vmem [resolvable:$true] %s309
          %315 = dma.hbm_to_vmem [thread:$0]  %s308, 4096, %s310, [#allocation10], 128, 128, 8
        $region24: #{tpu_custom_call.1} parent=11 // pred_fallthru
          _
        // Predicated region
        $region25: #{tpu_custom_call.1} parent=11 // pred_check
          %p316 = pneg %p172
        $region26: #{tpu_custom_call.1} parent=11 // pred_check_branch
          %318 = sbr.rel (%p316) target = $region28
        $region27: #{tpu_custom_call.1} parent=11 // pred_region
          %s319 = smul.u32 2, %s38
          %p320 = scmp.lt.s32.totalorder %s319, 1
          %s321 = scalar_select %p320, %s319, 1
          %s322 = scalar_lea.vmem %s4, %s321
          %s323 = smul.u32 2, %s38
        $region28: #{tpu_custom_call.1} parent=11 // pred_fallthru
          _
        // Predicated region
        $region29: #{tpu_custom_call.1} parent=11 // pred_check
          %p324 = pneg %p193
        $region30: #{tpu_custom_call.1} parent=11 // pred_check_branch
          %326 = sbr.rel (%p324) target = $region32
        $region31: #{tpu_custom_call.1} parent=11 // pred_region
          _
        $region32: #{tpu_custom_call.1} parent=11 // pred_fallthru
          _
        // Predicated region
        $region33: #{tpu_custom_call.1} parent=11 // pred_check
          %p327 = pneg %p214
        $region34: #{tpu_custom_call.1} parent=11 // pred_check_branch
          %329 = sbr.rel (%p327) target = $region36
        $region35: #{tpu_custom_call.1} parent=11 // pred_region
          _
        $region36: #{tpu_custom_call.1} parent=11 // pred_fallthru
          _
      $region12: #{tpu_custom_call.1} parent=5 // pred_fallthru
        _
      %p330 = scmp.lt.s32.totalorder %s26, 2
      // Predicated region
      $region37: #{tpu_custom_call.1} parent=5 // pred_check
        %p331 = pneg %p330
      $region38: #{tpu_custom_call.1} parent=5 // pred_check_branch
        %333 = sbr.rel (%p331) target = $region40
      $region39: #{tpu_custom_call.1} parent=5 // pred_region
        // Predicated region
        $region41: #{tpu_custom_call.1} parent=39 // pred_check
          %p334 = pneg %p88
        $region42: #{tpu_custom_call.1} parent=39 // pred_check_branch
          %336 = sbr.rel (%p334) target = $region44
        $region43: #{tpu_custom_call.1} parent=39 // pred_region
          %s337 = sand.u32 %s78, 1
          %s338 = scalar_lea.sflag [#allocation7], %s337
          %s339 = sand.u32 %s78, 1
          %s340 = smul.addr %s339, 8
          %s341 = scalar_lea.vmem [#allocation6], %s340
          %343 = vsyncadd %s338, 0
          %s344 = smul.addr %s34, 2
          %s345 = smul.addr %s33, 2
          %s346 = sadd.s32 %s344, %s345
          %s347 = smul.addr %s346, 4
          %s348 = scalar_lea.hbm %s1, %s347
          %s350 = sshll.u32 %s348, 4
          %s351 = int_to_ptr.hbm [resolvable:$true] %s350
          %s352 = sshll.u32 %s341, 4
          %s353 = int_to_ptr.vmem [resolvable:$true] %s352
          %355 = dma.hbm_to_vmem [thread:$0]  %s351, 128, %s353, %s338
        $region44: #{tpu_custom_call.1} parent=39 // pred_fallthru
          _
      $region40: #{tpu_custom_call.1} parent=5 // pred_fallthru
        _
      %p356 = scmp.le.s32.totalorder 1, %s26
      %p357 = scmp.lt.s32.totalorder %s26, 3
      %p358 = pnand %p356, %p357
      %p359 = pneg %p358
      // Predicated region
      $region45: #{tpu_custom_call.1} parent=5 // pred_check
        _
      $region46: #{tpu_custom_call.1} parent=5 // pred_check_branch
        %361 = sbr.rel (%p358) target = $region48
      $region47: #{tpu_custom_call.1} parent=5 // pred_region
        %s362 = ssub.s32 %s26, 1
        %s363 = sand.u32 %s81, 1
        %s364 = scalar_lea.sflag [#allocation7], %s363
        %s365 = sand.u32 %s81, 1
        %s366 = smul.addr %s365, 8
        %s367 = scalar_lea.vmem [#allocation6], %s366
        // Predicated region
        $region49: #{tpu_custom_call.1} parent=47 // pred_check
          %p368 = pneg %p94
        $region50: #{tpu_custom_call.1} parent=47 // pred_check_branch
          %370 = sbr.rel (%p368) target = $region52
        $region51: #{tpu_custom_call.1} parent=47 // pred_region
          %372 = dma.done %s364, 128
        $region52: #{tpu_custom_call.1} parent=47 // pred_fallthru
          _
        // Predicated region
        $region53: #{tpu_custom_call.1} parent=47 // pred_check
          %p373 = pneg %p146
        $region54: #{tpu_custom_call.1} parent=47 // pred_check_branch
          %375 = sbr.rel (%p373) target = $region56
        $region55: #{tpu_custom_call.1} parent=47 // pred_region
          %377 = dma.done [#allocation10], 4096
        $region56: #{tpu_custom_call.1} parent=47 // pred_fallthru
          _
        %p378 = pneg %p66
        %p379 = pneg %p63
        %s380 = sand.u32 %s81, 1
        %s381 = scalar_lea.sflag [#allocation7], %s380
        %s382 = sand.u32 %s81, 1
        %s383 = smul.addr %s382, 8
        %s384 = scalar_lea.vmem [#allocation6], %s383
        %p385 = pneg %p94
        %p386 = pneg %p91
        %p387 = scmp.lt.s32.totalorder %s37, 0
        %s388 = scalar_select %p387, %s37, 0
        %s389 = smul.addr %s388, 8
        %s390 = scalar_lea.vmem %s2, %s389
        %p391 = pneg %p120
        %p392 = pneg %p117
        %p393 = pneg %p146
        %p394 = pneg %p143
        %s395 = smul.u32 2, %s38
        %p396 = scmp.lt.s32.totalorder %s395, 1
        %s397 = scalar_select %p396, %s395, 1
        %s398 = scalar_lea.vmem %s4, %s397
        %p399 = pneg %p172
        %p400 = pneg %p169
        %p401 = pneg %p193
        %p402 = pneg %p190
        %p403 = pneg %p214
        %p404 = pneg %p211
        %p405 = pneg %p244
        %p406 = pneg %p241
        %s407 = sand.u32 %s231, 1
        %s408 = scalar_lea.sflag [#allocation8], %s407
        %s409 = sand.u32 %s231, 1
        %s410 = smul.addr %s409, 16
        %s411 = scalar_lea.vmem [#allocation11], %s410
        %p412 = pneg %p274
        %p413 = pneg %p271
        %s414 = sand.u32 %s261, 1
        %s415 = scalar_lea.sflag [#allocation13], %s414
        %s416 = sand.u32 %s261, 1
        %s417 = smul.addr %s416, 8
        %s418 = scalar_lea.vmem [#allocation12], %s417
        %p419 = scmp.lt.s32.totalorder %s37, 0
        %s420 = scalar_select %p419, %s37, 0
        %s421 = smul.addr %s420, 8
        %s422 = scalar_lea.vmem %s2, %s421
        %s423 = smul.u32 2, %s38
        %s424 = smul.u32 2, %s38
        %p425 = scmp.lt.s32.totalorder %s424, 1
        %s426 = scalar_select %p425, %s424, 1
        %s427 = scalar_lea.vmem %s4, %s426
        %s428 = smul.u32 2, %s38
        %s429 = smul.u32 2, %s38
        %s430 = smul.u32 2, %s38
        %p432 = scmp.eq.s32.totalorder %s37, 0
        %p433 = scmp.eq.s32.totalorder %s38, 0
        %p434 = pnand %p432, %p433
        %p435 = pneg %p434
        // Predicated region
        $region57: #{tpu_custom_call.1} parent=47 // pred_check
          _
        $region58: #{tpu_custom_call.1} parent=47 // pred_check_branch
          %437 = sbr.rel (%p434) target = $region60
        $region59: #{tpu_custom_call.1} parent=47 // pred_region
          %v438 = vlaneseq
          %vm439 = vcmp.ge.s32.totalorder %v438, 0
          %vm440 = vcmp.lt.s32.totalorder %v438, 256
          %vm441 = vmand %vm439, %vm440
          %442 = vst.msk [vmem:[#allocation4] sm:$0x3] %vm441, 0.0
        $region60: #{tpu_custom_call.1} parent=47 // pred_fallthru
          _
        // Predicated region
        $region61: #{tpu_custom_call.1} parent=47 // pred_check
          %p443 = pneg %p433
        $region62: #{tpu_custom_call.1} parent=47 // pred_check_branch
          %445 = sbr.rel (%p443) target = $region64
        $region63: #{tpu_custom_call.1} parent=47 // pred_region
          %v446 = vld [vmem:[%s367] sm:$0xff]
          %v447 = vld [vmem:[%s0] sm:$0xf]
          %v449 = vunpack.c.l.b16 %v446
          %v450 = vunpack.c.h.b16 %v446
          %v451 = vpack.c.b16 %v449, %v449
          %v452 = vpack.c.b16 %v450, %v450
          %vm453 = vcmask 64512
          %v455 = vsel %vm453, %v447, 0
          %vm457 = vcmask 1043456
          %v459 = vsel %vm457, %v451, 0
          %v462 = vsel %vm457, %v452, 0
          %464 = vmatpush.bf16.msra.mxu0 0
          %465 = vmatpush.bf16.msra.mxu0 0
          %466 = vmatpush.bf16.msra.mxu0 0
          %467 = vmatpush.bf16.msra.mxu0 0
          %468 = vmatpush.bf16.msra.mxu0 0
          %469 = vmatpush.bf16.msra.mxu0 0
          %470 = vmatpush.bf16.msra.mxu0 0
          %471 = vmatpush.bf16.msra.mxu0 %v459
          %472 = vmatmul.bf16.gmra.mxu0 %v455
          %v473 = vpop.f32.mrf.mxu0
          %v474 = vadd.f32 0.0, %v473
          %v475 = vpop.f32.mrf.mxu0
          %476 = vdwg.mxu0
          %477 = vmatpush.bf16.msra.mxu0 0
          %478 = vmatpush.bf16.msra.mxu0 0
          %479 = vmatpush.bf16.msra.mxu0 0
          %480 = vmatpush.bf16.msra.mxu0 0
          %481 = vmatpush.bf16.msra.mxu0 0
          %482 = vmatpush.bf16.msra.mxu0 0
          %483 = vmatpush.bf16.msra.mxu0 0
          %484 = vmatpush.bf16.msra.mxu0 %v462
          %485 = vmatmul.bf16.gmra.mxu0 %v455
          %v486 = vpop.f32.mrf.mxu0
          %v487 = vadd.f32 0.0, %v486
          %v488 = vpop.f32.mrf.mxu0
          %489 = vdwg.mxu0
          %v490 = vld [vmem:[#allocation4] sm:$0x3]
          %v492 = vperm.slane %v490, 0
          %v493 = vperm.slane %v490, 1
          %v496 = vadd.f32 %v492, %v474
          %v497 = vadd.f32 %v493, %v487
          %v498 = vld [vmem:[%s422] sm:$0xff]
          %500 = vset.pattern.permute.xlu0 0
          %501 = vperm.xlu0 %500, %v498
          %v502 = vpop.permute.xlu0 %501
          %v504 = vmul.f32 %v496, %v502
          %v505 = vmul.f32 %v497, %v502
          %v506 = vpack.c.bf16 %v505, %v504
          %507 = vst [vmem:[#allocation2] sm:$0xff] %v506
          %v508 = vld [vmem:[%s5] sm:$0x3]
          %v510 = vperm.slane %v508, 0
          %v511 = vperm.slane %v508, 1
          %v514 = vmul.f32 %v504, %v510
          %v515 = vmul.f32 %v505, %v511
          %v516 = vadd.f32 %v514, %v515
          %517 = vadd.xlane.f32.xlu0 %v516
          %v518 = vpop.xlane.xlu0 %517
          %s519 = sld [smem:[#allocation5]]
          %v520 = vstv %s519
          %v521 = vadd.f32 %v518, %v520
          %vm522 = vcmask 7168
          %523 = vst.msk [vmem:[#allocation3] sm:$0xff] %vm522, %v521
          %526 = vst [vmem:[#allocation1] sm:$0xff] %v496
          %527 = vst [vmem:[#allocation1 + $0x9] sm:$0xff] %v497
          %s528 = scalar_lea.vmem [#allocation1], 7
          %v529 = vld [vmem:[%s528] ss:$9 sm:$0xff]
          %v531 = vlaneseq
          %vm532 = vcmp.ge.s32.totalorder %v531, 0
          %vm533 = vcmp.lt.s32.totalorder %v531, 256
          %vm534 = vmand %vm532, %vm533
          %535 = vst.msk [vmem:[#allocation4] sm:$0x3] %vm534, %v529
        $region64: #{tpu_custom_call.1} parent=47 // pred_fallthru
          _
        %v536 = vld [vmem:[#allocation2] sm:$0xff]
        %v537 = vld [vmem:[#allocation9] sm:$0xff]
        %v538 = vld [vmem:[#allocation9 + $0x8] sm:$0xff]
        %v539 = vld [vmem:[#allocation9 + $0x10] sm:$0xff]
        %v540 = vld [vmem:[#allocation9 + $0x18] sm:$0xff]
        %v541 = vld [vmem:[#allocation9 + $0x20] sm:$0xff]
        %v542 = vld [vmem:[#allocation9 + $0x28] sm:$0xff]
        %v543 = vld [vmem:[#allocation9 + $0x30] sm:$0xff]
        %v544 = vld [vmem:[#allocation9 + $0x38] sm:$0xff]
        %v545 = vld [vmem:[#allocation9 + $0x40] sm:$0xff]
        %v546 = vld [vmem:[#allocation9 + $0x48] sm:$0xff]
        %v547 = vld [vmem:[#allocation9 + $0x50] sm:$0xff]
        %v548 = vld [vmem:[#allocation9 + $0x58] sm:$0xff]
        %v549 = vld [vmem:[#allocation9 + $0x60] sm:$0xff]
        %v550 = vld [vmem:[#allocation9 + $0x68] sm:$0xff]
        %v551 = vld [vmem:[#allocation9 + $0x70] sm:$0xff]
        %v552 = vld [vmem:[#allocation9 + $0x78] sm:$0xff]
        %v553 = vld [vmem:[#allocation9 + $0x80] sm:$0xff]
        %v554 = vld [vmem:[#allocation9 + $0x88] sm:$0xff]
        %v555 = vld [vmem:[#allocation9 + $0x90] sm:$0xff]
        %v556 = vld [vmem:[#allocation9 + $0x98] sm:$0xff]
        %v557 = vld [vmem:[#allocation9 + $0xa0] sm:$0xff]
        %v558 = vld [vmem:[#allocation9 + $0xa8] sm:$0xff]
        %v559 = vld [vmem:[#allocation9 + $0xb0] sm:$0xff]
        %v560 = vld [vmem:[#allocation9 + $0xb8] sm:$0xff]
        %v561 = vld [vmem:[#allocation9 + $0xc0] sm:$0xff]
        %v562 = vld [vmem:[#allocation9 + $0xc8] sm:$0xff]
        %v563 = vld [vmem:[#allocation9 + $0xd0] sm:$0xff]
        %v564 = vld [vmem:[#allocation9 + $0xd8] sm:$0xff]
        %v565 = vld [vmem:[#allocation9 + $0xe0] sm:$0xff]
        %v566 = vld [vmem:[#allocation9 + $0xe8] sm:$0xff]
        %v567 = vld [vmem:[#allocation9 + $0xf0] sm:$0xff]
        %v568 = vld [vmem:[#allocation9 + $0xf8] sm:$0xff]
        %v569 = vld [vmem:[%s427] sm:$0x3]
        %v571 = vperm.slane %v569, 0
        %v572 = vperm.slane %v569, 1
        %v576 = vunpack.c.l.b16 %v536
        %v577 = vunpack.c.h.b16 %v536
        %v578 = vpack.c.b16 %v576, %v576
        %v579 = vpack.c.b16 %v577, %v577
        %v614 = vunpack.c.l.b16 %v537
        %v615 = vunpack.c.h.b16 %v537
        %v616 = vunpack.c.l.b16 %v538
        %v617 = vunpack.c.h.b16 %v538
        %v618 = vunpack.c.l.b16 %v539
        %v619 = vunpack.c.h.b16 %v539
        %v620 = vunpack.c.l.b16 %v540
        %v621 = vunpack.c.h.b16 %v540
        %v622 = vunpack.c.l.b16 %v541
        %v623 = vunpack.c.h.b16 %v541
        %v624 = vunpack.c.l.b16 %v542
        %v625 = vunpack.c.h.b16 %v542
        %v626 = vunpack.c.l.b16 %v543
        %v627 = vunpack.c.h.b16 %v543
        %v628 = vunpack.c.l.b16 %v544
        %v629 = vunpack.c.h.b16 %v544
        %v630 = vunpack.c.l.b16 %v545
        %v631 = vunpack.c.h.b16 %v545
        %v632 = vunpack.c.l.b16 %v546
        %v633 = vunpack.c.h.b16 %v546
        %v634 = vunpack.c.l.b16 %v547
        %v635 = vunpack.c.h.b16 %v547
        %v636 = vunpack.c.l.b16 %v548
        %v637 = vunpack.c.h.b16 %v548
        %v638 = vunpack.c.l.b16 %v549
        %v639 = vunpack.c.h.b16 %v549
        %v640 = vunpack.c.l.b16 %v550
        %v641 = vunpack.c.h.b16 %v550
        %v642 = vunpack.c.l.b16 %v551
        %v643 = vunpack.c.h.b16 %v551
        %v644 = vunpack.c.l.b16 %v552
        %v645 = vunpack.c.h.b16 %v552
        %v646 = vunpack.c.l.b16 %v553
        %v647 = vunpack.c.h.b16 %v553
        %v648 = vunpack.c.l.b16 %v554
        %v649 = vunpack.c.h.b16 %v554
        %v650 = vunpack.c.l.b16 %v555
        %v651 = vunpack.c.h.b16 %v555
        %v652 = vunpack.c.l.b16 %v556
        %v653 = vunpack.c.h.b16 %v556
        %v654 = vunpack.c.l.b16 %v557
        %v655 = vunpack.c.h.b16 %v557
        %v656 = vunpack.c.l.b16 %v558
        %v657 = vunpack.c.h.b16 %v558
        %v658 = vunpack.c.l.b16 %v559
        %v659 = vunpack.c.h.b16 %v559
        %v660 = vunpack.c.l.b16 %v560
        %v661 = vunpack.c.h.b16 %v560
        %v662 = vunpack.c.l.b16 %v561
        %v663 = vunpack.c.h.b16 %v561
        %v664 = vunpack.c.l.b16 %v562
        %v665 = vunpack.c.h.b16 %v562
        %v666 = vunpack.c.l.b16 %v563
        %v667 = vunpack.c.h.b16 %v563
        %v668 = vunpack.c.l.b16 %v564
        %v669 = vunpack.c.h.b16 %v564
        %v670 = vunpack.c.l.b16 %v565
        %v671 = vunpack.c.h.b16 %v565
        %v672 = vunpack.c.l.b16 %v566
        %v673 = vunpack.c.h.b16 %v566
        %v674 = vunpack.c.l.b16 %v567
        %v675 = vunpack.c.h.b16 %v567
        %v676 = vunpack.c.l.b16 %v568
        %v677 = vunpack.c.h.b16 %v568
        %v678 = vpack.c.b16 %v616, %v614
        %v679 = vpack.c.b16 %v617, %v615
        %v680 = vpack.c.b16 %v620, %v618
        %v681 = vpack.c.b16 %v621, %v619
        %v682 = vpack.c.b16 %v624, %v622
        %v683 = vpack.c.b16 %v625, %v623
        %v684 = vpack.c.b16 %v628, %v626
        %v685 = vpack.c.b16 %v629, %v627
        %v686 = vpack.c.b16 %v632, %v630
        %v687 = vpack.c.b16 %v633, %v631
        %v688 = vpack.c.b16 %v636, %v634
        %v689 = vpack.c.b16 %v637, %v635
        %v690 = vpack.c.b16 %v640, %v638
        %v691 = vpack.c.b16 %v641, %v639
        %v692 = vpack.c.b16 %v644, %v642
        %v693 = vpack.c.b16 %v645, %v643
        %v694 = vpack.c.b16 %v648, %v646
        %v695 = vpack.c.b16 %v649, %v647
        %v696 = vpack.c.b16 %v652, %v650
        %v697 = vpack.c.b16 %v653, %v651
        %v698 = vpack.c.b16 %v656, %v654
        %v699 = vpack.c.b16 %v657, %v655
        %v700 = vpack.c.b16 %v660, %v658
        %v701 = vpack.c.b16 %v661, %v659
        %v702 = vpack.c.b16 %v664, %v662
        %v703 = vpack.c.b16 %v665, %v663
        %v704 = vpack.c.b16 %v668, %v666
        %v705 = vpack.c.b16 %v669, %v667
        %v706 = vpack.c.b16 %v672, %v670
        %v707 = vpack.c.b16 %v673, %v671
        %v708 = vpack.c.b16 %v676, %v674
        %v709 = vpack.c.b16 %v677, %v675
        %742 = vmatpush.bf16.msra.mxu0 %v692
        %743 = vmatpush.bf16.msra.mxu0 %v690
        %744 = vmatpush.bf16.msra.mxu0 %v688
        %745 = vmatpush.bf16.msra.mxu0 %v686
        %746 = vmatpush.bf16.msra.mxu0 %v684
        %747 = vmatpush.bf16.msra.mxu0 %v682
        %748 = vmatpush.bf16.msra.mxu0 %v680
        %749 = vmatpush.bf16.msra.mxu0 %v678
        %750 = vmatmul.bf16.gmra.mxu0 %v578
        %v751 = vpop.f32.mrf.mxu0
        %v752 = vadd.f32 %v571, %v751
        %v753 = vpop.f32.mrf.mxu0
        %754 = vdwg.mxu0
        %755 = vmatpush.bf16.msra.mxu0 %v708
        %756 = vmatpush.bf16.msra.mxu0 %v706
        %757 = vmatpush.bf16.msra.mxu0 %v704
        %758 = vmatpush.bf16.msra.mxu0 %v702
        %759 = vmatpush.bf16.msra.mxu0 %v700
        %760 = vmatpush.bf16.msra.mxu0 %v698
        %761 = vmatpush.bf16.msra.mxu0 %v696
        %762 = vmatpush.bf16.msra.mxu0 %v694
        %763 = vmatmul.bf16.gmra.mxu0 %v579
        %v764 = vpop.f32.mrf.mxu0
        %v765 = vadd.f32 %v752, %v764
        %v766 = vpop.f32.mrf.mxu0
        %767 = vdwg.mxu0
        %768 = vmatpush.bf16.msra.mxu0 %v693
        %769 = vmatpush.bf16.msra.mxu0 %v691
        %770 = vmatpush.bf16.msra.mxu0 %v689
        %771 = vmatpush.bf16.msra.mxu0 %v687
        %772 = vmatpush.bf16.msra.mxu0 %v685
        %773 = vmatpush.bf16.msra.mxu0 %v683
        %774 = vmatpush.bf16.msra.mxu0 %v681
        %775 = vmatpush.bf16.msra.mxu0 %v679
        %776 = vmatmul.bf16.gmra.mxu0 %v578
        %v777 = vpop.f32.mrf.mxu0
        %v778 = vadd.f32 %v572, %v777
        %v779 = vpop.f32.mrf.mxu0
        %780 = vdwg.mxu0
        %781 = vmatpush.bf16.msra.mxu0 %v709
        %782 = vmatpush.bf16.msra.mxu0 %v707
        %783 = vmatpush.bf16.msra.mxu0 %v705
        %784 = vmatpush.bf16.msra.mxu0 %v703
        %785 = vmatpush.bf16.msra.mxu0 %v701
        %786 = vmatpush.bf16.msra.mxu0 %v699
        %787 = vmatpush.bf16.msra.mxu0 %v697
        %788 = vmatpush.bf16.msra.mxu0 %v695
        %789 = vmatmul.bf16.gmra.mxu0 %v579
        %v790 = vpop.f32.mrf.mxu0
        %v791 = vadd.f32 %v778, %v790
        %v792 = vpop.f32.mrf.mxu0
        %793 = vdwg.mxu0
        %v794 = vpack.c.bf16 %v791, %v765
        %795 = vst [vmem:[%s418] sm:$0xff] %v794
        %v796 = vld [vmem:[#allocation3] sm:$0xff]
        %798 = vset.pattern.permute.xlu0 0
        %799 = vperm.xlu0 %798, %v796
        %v800 = vpop.permute.xlu0 %799
        %v802 = vadd.f32 %v765, %v800
        %v803 = vadd.f32 %v791, %v800
        %804 = vst [vmem:[%s411] sm:$0xff] %v802
        %805 = vst [vmem:[%s411 + $0x8] sm:$0xff] %v803
        %s806 = sand.u32 %s231, 1
        %s807 = scalar_lea.sflag [#allocation8], %s806
        %s808 = sand.u32 %s231, 1
        %s809 = smul.addr %s808, 16
        %s810 = scalar_lea.vmem [#allocation11], %s809
        %s811 = sand.u32 %s261, 1
        %s812 = scalar_lea.sflag [#allocation13], %s811
        %s813 = sand.u32 %s261, 1
        %s814 = smul.addr %s813, 8
        %s815 = scalar_lea.vmem [#allocation12], %s814
        // Predicated region
        $region65: #{tpu_custom_call.1} parent=47 // pred_check
          %p816 = pneg %p241
        $region66: #{tpu_custom_call.1} parent=47 // pred_check_branch
          %818 = sbr.rel (%p816) target = $region68
        $region67: #{tpu_custom_call.1} parent=47 // pred_region
          %s819 = smul.u32 2, %s38
          %821 = vsyncadd %s807, 0
          %s822 = smul.addr %s37, 2
          %s823 = sadd.s32 %s819, %s822
          %s824 = smul.addr %s36, 2
          %s825 = sadd.s32 %s823, %s824
          %s826 = smul.addr %s825, 8
          %s827 = scalar_lea.hbm %s7, %s826
          %s829 = sshll.u32 %s810, 4
          %s830 = int_to_ptr.vmem [resolvable:$true] %s829
          %s831 = sshll.u32 %s827, 4
          %s832 = int_to_ptr.hbm [resolvable:$true] %s831
          %834 = dma.vmem_to_hbm [thread:$0]  %s830, 256, %s832, %s807
        $region68: #{tpu_custom_call.1} parent=47 // pred_fallthru
          _
        // Predicated region
        $region69: #{tpu_custom_call.1} parent=47 // pred_check
          %p835 = pneg %p271
        $region70: #{tpu_custom_call.1} parent=47 // pred_check_branch
          %837 = sbr.rel (%p835) target = $region72
        $region71: #{tpu_custom_call.1} parent=47 // pred_region
          %s838 = smul.u32 2, %s38
          %840 = vsyncadd %s812, 0
          %s841 = smul.addr %s37, 2
          %s842 = sadd.s32 %s838, %s841
          %s843 = smul.addr %s36, 2
          %s844 = sadd.s32 %s842, %s843
          %s845 = smul.addr %s844, 4
          %s846 = scalar_lea.hbm %s8, %s845
          %s848 = sshll.u32 %s815, 4
          %s849 = int_to_ptr.vmem [resolvable:$true] %s848
          %s850 = sshll.u32 %s846, 4
          %s851 = int_to_ptr.hbm [resolvable:$true] %s850
          %853 = dma.vmem_to_hbm [thread:$0]  %s849, 128, %s851, %s812
        $region72: #{tpu_custom_call.1} parent=47 // pred_fallthru
          _
      $region48: #{tpu_custom_call.1} parent=5 // pred_fallthru
        _
      %p854 = scmp.le.s32.totalorder 2, %s26
      // Predicated region
      $region73: #{tpu_custom_call.1} parent=5 // pred_check
        %p855 = pneg %p854
      $region74: #{tpu_custom_call.1} parent=5 // pred_check_branch
        %857 = sbr.rel (%p855) target = $region76
      $region75: #{tpu_custom_call.1} parent=5 // pred_region
        %s858 = ssub.s32 %s26, 2
        // Predicated region
        $region77: #{tpu_custom_call.1} parent=75 // pred_check
          %p859 = pneg %p247
        $region78: #{tpu_custom_call.1} parent=75 // pred_check_branch
          %861 = sbr.rel (%p859) target = $region80
        $region79: #{tpu_custom_call.1} parent=75 // pred_region
          %s862 = sand.u32 %s232, 1
          %s863 = scalar_lea.sflag [#allocation8], %s862
          %s864 = sand.u32 %s232, 1
          %s865 = smul.addr %s864, 16
          %s866 = scalar_lea.vmem [#allocation11], %s865
          %868 = dma.done %s863, 256
        $region80: #{tpu_custom_call.1} parent=75 // pred_fallthru
          _
        // Predicated region
        $region81: #{tpu_custom_call.1} parent=75 // pred_check
          %p869 = pneg %p277
        $region82: #{tpu_custom_call.1} parent=75 // pred_check_branch
          %871 = sbr.rel (%p869) target = $region84
        $region83: #{tpu_custom_call.1} parent=75 // pred_region
          %s872 = sand.u32 %s262, 1
          %s873 = scalar_lea.sflag [#allocation13], %s872
          %s874 = sand.u32 %s262, 1
          %s875 = smul.addr %s874, 8
          %s876 = scalar_lea.vmem [#allocation12], %s875
          %878 = dma.done %s873, 128
        $region84: #{tpu_custom_call.1} parent=75 // pred_fallthru
          _
      $region76: #{tpu_custom_call.1} parent=5 // pred_fallthru
        _
    $region6: #{tpu_custom_call.1} parent=1 // loop_footer
      %s30 = sadd.s32 1, %s26
    $region7: #{tpu_custom_call.1} parent=1 // loop_footer_branch
      %25 = sbr.rel target = $region3
    $region8: #{tpu_custom_call.1} parent=1 // loop_exit
      _
    %879 = vsyncpa [#allocation7], 1
    %s880 = scalar_lea.sflag [#allocation7], 1
    %881 = vsyncpa %s880, 1
    %882 = vsyncpa [#allocation10], 1
    %883 = vsyncpa [#allocation8], 1
    %s884 = scalar_lea.sflag [#allocation8], 1
    %885 = vsyncpa %s884, 1
    %886 = vsyncpa [#allocation13], 1
    %s887 = scalar_lea.sflag [#allocation13], 1
    %888 = vsyncpa %s887, 1

</llo_original>
